<compile_context>
chip_gen: v7x
topology: tpu7x:2x2x1
jax: 0.10.0
libtpu: 0.0.40
codegen_flags: <defaults>
</compile_context>

<pallas_src>
import functools

import jax
import jax.numpy as jnp
import numpy as np
from jax.experimental import pallas as pl
from jax.experimental.pallas import tpu as pltpu


def _round_up(x: int, m: int) -> int:
    return ((x + m - 1) // m) * m


def _igcu_kernel(x_ref, cr_ref, ci_ref, o_ref):
    # x_ref : (2, TM, Lpad)   rows = flattened (batch, half-channel)
    #         x_ref[0] = imaginary-channel rows, x_ref[1] = real rows.
    # cr_ref, ci_ref : (Lpad, TN)   single-buffered, VMEM-resident basis tiles.
    # o_ref : (TM, TN)
    i_tile = x_ref[0]                         # (TM, Lpad)
    r_tile = x_ref[1]                         # (TM, Lpad)
    acc = jnp.dot(r_tile, cr_ref[...], preferred_element_type=jnp.float32)
    acc = acc + jnp.dot(i_tile, ci_ref[...], preferred_element_type=jnp.float32)
    o_ref[...] = acc.astype(o_ref.dtype)


@functools.lru_cache(maxsize=None)
def _irfft_matrices(L: int, n: int, l_pad: int, n_pad: int, dtype_name: str):
    """Real (l_pad, n_pad) matrices Cr, Ci with irfft(r + i*j) = r @ Cr + i @ Ci.

    Rows [L:l_pad] and columns [n:n_pad] are zero padding so both the x tiles
    and the output tiles are lane-dense. Built once with numpy and cached so
    repeated forwards reuse the same device constants.
    """
    k = np.arange(L, dtype=np.float64)[:, None]          # (L, 1)
    m = np.arange(n, dtype=np.float64)[None, :]          # (1, n)
    ang = 2.0 * np.pi * k * m / float(n)                 # (L, n)
    edge = (k == 0) | (k == (L - 1))                      # DC / Nyquist bins
    w_re = np.where(edge, 1.0, 2.0)
    w_im = np.where(edge, 0.0, 2.0)                       # imag ignored at edges
    Cr = np.zeros((l_pad, n_pad), dtype=np.float32)
    Ci = np.zeros((l_pad, n_pad), dtype=np.float32)
    Cr[:L, :n] = np.cos(ang) * w_re / float(n)
    Ci[:L, :n] = -np.sin(ang) * w_im / float(n)
    dt = jnp.dtype(dtype_name)
    return jnp.asarray(Cr, dtype=dt), jnp.asarray(Ci, dtype=dt)


def _vmem_budget_bytes() -> int:
    """Plan for ~0.75x physical VMEM (leaves room for compiler scratch)."""
    cap = 64 * 2 ** 20          # conservative fallback = v7x per-TC VMEM
    try:
        info = pltpu.get_tpu_info()
        cap = int(getattr(info, "vmem_capacity_bytes", cap)) or cap
    except Exception:
        pass
    return int(0.75 * cap)      # ~48 MiB on 64 MiB parts, ~96 MiB on 128 MiB parts


def _working_set_bytes(tm: int, tn: int, l_pad: int, itm: int) -> int:
    x_bytes = 2 * (2 * tm * l_pad * itm)      # double-buffered x blocks
    w_bytes = 1 * (2 * l_pad * tn * itm)      # single-buffered Cr + Ci (Buffered(1))
    o_bytes = 2 * (tm * tn * 4)               # double-buffered f32 output blocks
    return x_bytes + w_bytes + o_bytes


def _pick_tiles(m8, n128, l_pad, itm, budget, row_tile, time_tile):
    tm = min(_round_up(row_tile, 8), m8)
    tn = min(_round_up(time_tile, 128), n128)
    # Shrink whichever dimension contributes more bytes until we fit.
    while _working_set_bytes(tm, tn, l_pad, itm) > budget:
        tn_bytes = 2 * l_pad * tn * itm + 2 * tm * tn * 4
        tm_bytes = 4 * tm * l_pad * itm
        if tn > 128 and (tn_bytes >= tm_bytes or tm <= 8):
            tn = max(128, _round_up(tn // 2, 128))
        elif tm > 8:
            tm = max(8, _round_up(tm // 2, 8))
        else:
            break
    return tm, tn


def igcu_forward(x, *, compute_dtype=jnp.float32, row_tile=512, time_tile=2048):
    """x: (B, C, L) -> (B, C//2, 2*(L-1)) float32, matching torch.fft.irfft."""
    B, C, L = x.shape
    assert C % 2 == 0, "channel dim must be even (split into imag/real halves)"
    assert L >= 2, "need at least 2 frequency bins for irfft"
    half = C // 2
    n = 2 * (L - 1)

    l_pad = _round_up(L, 128)                 # lane-dense frequency axis
    M = B * half                              # MXU M dim spans batches
    m8 = _round_up(M, 8)
    n128 = _round_up(n, 128)                  # lane-dense output time axis

    itm = jnp.dtype(compute_dtype).itemsize
    budget = _vmem_budget_bytes()
    TM, TN = _pick_tiles(m8, n128, l_pad, itm, budget, row_tile, time_tile)

    m_pad = _round_up(m8, TM)                 # tiles divide padded extents exactly
    n_pad = _round_up(n128, TN)

    dtype_name = jnp.dtype(compute_dtype).name
    Cr, Ci = _irfft_matrices(L, n, l_pad, n_pad, dtype_name)

    # Flatten (batch, half-channel) into one row axis and fold the lane pad of
    # L plus the dtype cast into the same copy (one XLA fusion in HBM).
    x2 = jnp.transpose(x.reshape(B, 2, half, L), (1, 0, 2, 3)).reshape(2, M, L)
    x2 = jnp.pad(x2, ((0, 0), (0, m_pad - M), (0, l_pad - L))).astype(compute_dtype)

    grid = (n_pad // TN, m_pad // TM)         # basis index depends only on axis 0

    working = _working_set_bytes(TM, TN, l_pad, itm)
    vmem_limit = int(min(working + 4 * 2 ** 20, 128 * 2 ** 20))

    cost = pl.CostEstimate(
        flops=int(2 * 2 * M * L * n),                         # two real matmuls
        transcendentals=0,
        bytes_accessed=int((2 * M * L + 2 * l_pad * n_pad) * itm + M * n * 4),
    )

    out_pad = pl.pallas_call(
        _igcu_kernel,
        out_shape=jax.ShapeDtypeStruct((m_pad, n_pad), jnp.float32),
        grid=grid,
        in_specs=[
            # one block holds both channel halves for TM flattened rows
            pl.BlockSpec((2, TM, l_pad), lambda j, m: (0, m, 0)),
            # irfft basis: index depends only on the outermost time-tile axis
            # -> single-buffered and VMEM-resident across the whole row sweep.
            pl.BlockSpec((l_pad, TN), lambda j, m: (0, j),
                         pipeline_mode=pl.Buffered(1)),
            pl.BlockSpec((l_pad, TN), lambda j, m: (0, j),
                         pipeline_mode=pl.Buffered(1)),
        ],
        out_specs=pl.BlockSpec((TM, TN), lambda j, m: (m, j)),
        compiler_params=pltpu.CompilerParams(
            dimension_semantics=("parallel", "parallel"),
            vmem_limit_bytes=vmem_limit,
        ),
        cost_estimate=cost,
    )(x2, Cr, Ci)

    return out_pad[:M, :n].reshape(B, half, n)


if __name__ == "__main__":
    key = jax.random.PRNGKey(0)
    B, C, L = 2, 4, 16
    x = jax.random.normal(key, (B, C, L), dtype=jnp.float32)

    out = jax.block_until_ready(igcu_forward(x))

    # Reference check against jnp.fft.irfft (same C2R semantics as torch.fft.irfft).
    half = C // 2
    y = x[:, half:, :] + 1j * x[:, :half, :]
    ref = jnp.fft.irfft(y, axis=-1)
    assert out.shape == (B, half, 2 * (L - 1)), out.shape
    if not np.allclose(np.asarray(out), np.asarray(ref), rtol=1e-3, atol=2e-3):
        raise AssertionError("Pallas iGCU output does not match jnp.fft.irfft reference")

    print("KERNEL_OK")
</pallas_src>

<mosaic_0001>
module attributes {stable_mosaic.version = 11 : i64} {
  func.func @_igcu_kernel(%arg0: i32, %arg1: i32, %arg2: memref<2x8x128xf32, #tpu.memory_space<vmem>>, %arg3: memref<128x128xf32, #tpu.memory_space<vmem>>, %arg4: memref<128x128xf32, #tpu.memory_space<vmem>>, %arg5: memref<8x128xf32, #tpu.memory_space<vmem>>) attributes {dimension_semantics = [#tpu.dimension_semantics<parallel>, #tpu.dimension_semantics<parallel>], iteration_bounds = array<i64: 1, 1>, scalar_prefetch = 0 : i64, scratch_operands = 0 : i64, tpu.core_type = #tpu.core_type<tc>, window_params = [{transform_indices = @transform_0, window_bounds = array<i64: 2, 8, 128>}, {pipeline_mode = #tpu.pipeline_mode<synchronous>, transform_indices = @transform_1, window_bounds = array<i64: 128, 128>}, {pipeline_mode = #tpu.pipeline_mode<synchronous>, transform_indices = @transform_2, window_bounds = array<i64: 128, 128>}, {transform_indices = @transform_3, window_bounds = array<i64: 8, 128>}]} {
    %c0 = arith.constant 0 : index
    %c0_0 = arith.constant 0 : index
    %c0_1 = arith.constant 0 : index
    %0 = vector.load %arg2[%c0, %c0_0, %c0_1] : memref<2x8x128xf32, #tpu.memory_space<vmem>>, vector<1x8x128xf32>
    %1 = vector.shape_cast %0 : vector<1x8x128xf32> to vector<8x128xf32>
    %c1 = arith.constant 1 : index
    %c0_2 = arith.constant 0 : index
    %c0_3 = arith.constant 0 : index
    %2 = vector.load %arg2[%c1, %c0_2, %c0_3] : memref<2x8x128xf32, #tpu.memory_space<vmem>>, vector<1x8x128xf32>
    %3 = vector.shape_cast %2 : vector<1x8x128xf32> to vector<8x128xf32>
    %c0_4 = arith.constant 0 : index
    %c0_5 = arith.constant 0 : index
    %4 = vector.load %arg3[%c0_4, %c0_5] : memref<128x128xf32, #tpu.memory_space<vmem>>, vector<128x128xf32>
    %cst = arith.constant dense<0.000000e+00> : vector<8x128xf32>
    %5 = tpu.matmul %3, %4, %cst {dimension_numbers = #tpu.dot_dimension_numbers<[1], [0], [0], [1], [0, 0, 1, 1], [], []>} : vector<8x128xf32>, vector<128x128xf32>, vector<8x128xf32> -> vector<8x128xf32>
    %c0_6 = arith.constant 0 : index
    %c0_7 = arith.constant 0 : index
    %6 = vector.load %arg4[%c0_6, %c0_7] : memref<128x128xf32, #tpu.memory_space<vmem>>, vector<128x128xf32>
    %cst_8 = arith.constant dense<0.000000e+00> : vector<8x128xf32>
    %7 = tpu.matmul %1, %6, %cst_8 {dimension_numbers = #tpu.dot_dimension_numbers<[1], [0], [0], [1], [0, 0, 1, 1], [], []>} : vector<8x128xf32>, vector<128x128xf32>, vector<8x128xf32> -> vector<8x128xf32>
    %8 = arith.addf %5, %7 : vector<8x128xf32>
    %c0_9 = arith.constant 0 : index
    %c0_10 = arith.constant 0 : index
    %9 = vector.load %arg5[%c0_9, %c0_10] : memref<8x128xf32, #tpu.memory_space<vmem>>, vector<8x128xf32>
    tpu.vector_store %arg5[%c0_9, %c0_10], %8 {strides = array<i32>} : memref<8x128xf32, #tpu.memory_space<vmem>>, vector<8x128xf32>,
    return
  }
  func.func @transform_0(%arg0: i32, %arg1: i32) -> (i32, i32, i32) {
    %c0_i32 = arith.constant 0 : i32
    %c0_i32_0 = arith.constant 0 : i32
    %c0_i32_1 = arith.constant 0 : i32
    return %c0_i32, %arg1, %c0_i32_0 : i32, i32, i32
  }
  func.func @transform_1(%arg0: i32, %arg1: i32) -> (i32, i32) {
    %c0_i32 = arith.constant 0 : i32
    %c0_i32_0 = arith.constant 0 : i32
    return %c0_i32, %arg0 : i32, i32
  }
  func.func @transform_2(%arg0: i32, %arg1: i32) -> (i32, i32) {
    %c0_i32 = arith.constant 0 : i32
    %c0_i32_0 = arith.constant 0 : i32
    return %c0_i32, %arg0 : i32, i32
  }
  func.func @transform_3(%arg0: i32, %arg1: i32) -> (i32, i32) {
    %c0_i32 = arith.constant 0 : i32
    return %arg1, %arg0 : i32, i32
  }
}

</mosaic_0001>

<llo_original>
// kernel: tpu_custom_call.1
$region0: #{tpu_custom_call.1}
  #allocation0 [shape = 'u32[]', space=smem, size = 0x4, offset = 0x4, fixed_abs, tag = 'smem constant byte address 0x4 - core index']
  #allocation1 [shape = 'u32[144,128]{1,0:T(1,128)}', space=vmem, size = 0x12000, scoped, tag = 'internal scratch']
  %s0 = inlined_call_operand.hbm [shape: f32[2,8,128], index: 0, kind: input, shape index: {}]
  %s1 = inlined_call_operand.hbm [shape: f32[128,128], index: 1, kind: input, shape index: {}]
  %s2 = inlined_call_operand.hbm [shape: f32[128,128], index: 2, kind: input, shape index: {}]
  %s3 = inlined_call_operand.hbm [shape: f32[8,128], index: 3, kind: output, shape index: {}]
  %s4 = sld [smem:[#allocation0]]
  $region34: #{tpu_custom_call.1} parent=0
    _
  %s6 = ssub.s32 1, %s4
  %s7 = scalar_select 0, %s6, %s4
  $region1: #{tpu_custom_call.1} parent=0
    #allocation2 [shape = 'u8[8192]{0}', space=vmem, size = 0x2000, scoped, tag = 'input window, operand 0, single buffered']
    #allocation3 [shape = 's32[1]{0}', space=sflag, size = 0x4, scoped, tag = 'scoped memory for tpu_custom_call.1']
    #allocation4 [shape = 's32[1]{0}', space=sflag, size = 0x4, scoped, tag = 'scoped memory for tpu_custom_call.1']
    #allocation5 [shape = 'u8[65536]{0}', space=vmem, size = 0x10000, scoped, tag = 'input window, operand 1, single buffered']
    #allocation6 [shape = 's32[1]{0}', space=sflag, size = 0x4, scoped, tag = 'scoped memory for tpu_custom_call.1']
    #allocation7 [shape = 'u8[65536]{0}', space=vmem, size = 0x10000, scoped, tag = 'input window, operand 2, single buffered']
    #allocation8 [shape = 'u8[4096]{0}', space=vmem, size = 0x1000, scoped, tag = 'output window, operand 0, single buffered']
    %8 = vsyncpa [#allocation3], 0
    %9 = vsyncpa [#allocation6], 0
    %10 = vsyncpa [#allocation4], 0
    // Predicated region
    $region2: #{tpu_custom_call.1} parent=1 // pred_check
      _
    $region3: #{tpu_custom_call.1} parent=1 // pred_check_branch
      %12 = sbr.rel (0) target = $region5
    $region4: #{tpu_custom_call.1} parent=1 // pred_region
      %s14 = ssub.s32 256, 256
      %15 = vsyncadd [#allocation3], %s14
      %s16 = sshll.u32 [#allocation2], 4
      %s17 = int_to_ptr.vmem [resolvable:$true] %s16
      %22 = dma.hbm_to_vmem [thread:$0]  %s0, 256, %s17, [#allocation3], 128, 128, 8
    $region5: #{tpu_custom_call.1} parent=1 // pred_fallthru
      _
    // Predicated region
    $region6: #{tpu_custom_call.1} parent=1 // pred_check
      _
    $region7: #{tpu_custom_call.1} parent=1 // pred_check_branch
      %24 = sbr.rel (0) target = $region9
    $region8: #{tpu_custom_call.1} parent=1 // pred_region
      %s26 = ssub.s32 2048, 2048
      %27 = vsyncadd [#allocation6], %s26
      %s28 = sshll.u32 [#allocation5], 4
      %s29 = int_to_ptr.vmem [resolvable:$true] %s28
      %34 = dma.hbm_to_vmem [thread:$0]  %s1, 2048, %s29, [#allocation6], 128, 128, 8
    $region9: #{tpu_custom_call.1} parent=1 // pred_fallthru
      _
    // Predicated region
    $region10: #{tpu_custom_call.1} parent=1 // pred_check
      _
    $region11: #{tpu_custom_call.1} parent=1 // pred_check_branch
      %36 = sbr.rel (0) target = $region13
    $region12: #{tpu_custom_call.1} parent=1 // pred_region
      %s38 = ssub.s32 2048, 2048
      %39 = vsyncadd [#allocation6], %s38
      %s40 = sshll.u32 [#allocation7], 4
      %s41 = int_to_ptr.vmem [resolvable:$true] %s40
      %46 = dma.hbm_to_vmem [thread:$0]  %s2, 2048, %s41, [#allocation6], 128, 128, 8
    $region13: #{tpu_custom_call.1} parent=1 // pred_fallthru
      _
    // Predicated region
    $region14: #{tpu_custom_call.1} parent=1 // pred_check
      _
    $region15: #{tpu_custom_call.1} parent=1 // pred_check_branch
      %48 = sbr.rel (0) target = $region17
    $region16: #{tpu_custom_call.1} parent=1 // pred_region
      %49 = dma.done [#allocation3], 256
    $region17: #{tpu_custom_call.1} parent=1 // pred_fallthru
      _
    // Predicated region
    $region18: #{tpu_custom_call.1} parent=1 // pred_check
      _
    $region19: #{tpu_custom_call.1} parent=1 // pred_check_branch
      %51 = sbr.rel (0) target = $region21
    $region20: #{tpu_custom_call.1} parent=1 // pred_region
      %52 = dma.done [#allocation6], 2048
    $region21: #{tpu_custom_call.1} parent=1 // pred_fallthru
      _
    // Predicated region
    $region22: #{tpu_custom_call.1} parent=1 // pred_check
      _
    $region23: #{tpu_custom_call.1} parent=1 // pred_check_branch
      %54 = sbr.rel (0) target = $region25
    $region24: #{tpu_custom_call.1} parent=1 // pred_region
      %55 = dma.done [#allocation6], 2048
    $region25: #{tpu_custom_call.1} parent=1 // pred_fallthru
      _
    %v56 = vld [vmem:[#allocation2] sm:$0xff]
    %s57 = scalar_lea.vmem [#allocation2], 8
    %v58 = vld [vmem:[%s57] sm:$0xff]
    %v59 = vld [vmem:[#allocation5] sm:$0xff]
    %v60 = vld [vmem:[#allocation5 + $0x8] sm:$0xff]
    %v61 = vld [vmem:[#allocation5 + $0x10] sm:$0xff]
    %v62 = vld [vmem:[#allocation5 + $0x18] sm:$0xff]
    %v63 = vld [vmem:[#allocation5 + $0x20] sm:$0xff]
    %v64 = vld [vmem:[#allocation5 + $0x28] sm:$0xff]
    %v65 = vld [vmem:[#allocation5 + $0x30] sm:$0xff]
    %v66 = vld [vmem:[#allocation5 + $0x38] sm:$0xff]
    %v67 = vld [vmem:[#allocation5 + $0x40] sm:$0xff]
    %v68 = vld [vmem:[#allocation5 + $0x48] sm:$0xff]
    %v69 = vld [vmem:[#allocation5 + $0x50] sm:$0xff]
    %v70 = vld [vmem:[#allocation5 + $0x58] sm:$0xff]
    %v71 = vld [vmem:[#allocation5 + $0x60] sm:$0xff]
    %v72 = vld [vmem:[#allocation5 + $0x68] sm:$0xff]
    %v73 = vld [vmem:[#allocation5 + $0x70] sm:$0xff]
    %v74 = vld [vmem:[#allocation5 + $0x78] sm:$0xff]
    %v75 = vld [vmem:[#allocation7] sm:$0xff]
    %v76 = vld [vmem:[#allocation7 + $0x8] sm:$0xff]
    %v77 = vld [vmem:[#allocation7 + $0x10] sm:$0xff]
    %v78 = vld [vmem:[#allocation7 + $0x18] sm:$0xff]
    %v79 = vld [vmem:[#allocation7 + $0x20] sm:$0xff]
    %v80 = vld [vmem:[#allocation7 + $0x28] sm:$0xff]
    %v81 = vld [vmem:[#allocation7 + $0x30] sm:$0xff]
    %v82 = vld [vmem:[#allocation7 + $0x38] sm:$0xff]
    %v83 = vld [vmem:[#allocation7 + $0x40] sm:$0xff]
    %v84 = vld [vmem:[#allocation7 + $0x48] sm:$0xff]
    %v85 = vld [vmem:[#allocation7 + $0x50] sm:$0xff]
    %v86 = vld [vmem:[#allocation7 + $0x58] sm:$0xff]
    %v87 = vld [vmem:[#allocation7 + $0x60] sm:$0xff]
    %v88 = vld [vmem:[#allocation7 + $0x68] sm:$0xff]
    %v89 = vld [vmem:[#allocation7 + $0x70] sm:$0xff]
    %v90 = vld [vmem:[#allocation7 + $0x78] sm:$0xff]
    %91 = vmatprep.subr.mxu0 0.0
    %92 = vmatpush1.msra.mxu0 %v75
    %93 = vmatprep.subr.mxu0 0.0
    %94 = vmatpush1.msra.mxu0 %v76
    %95 = vmatprep.subr.mxu0 0.0
    %96 = vmatpush1.msra.mxu0 %v77
    %97 = vmatprep.subr.mxu0 0.0
    %98 = vmatpush1.msra.mxu0 %v78
    %99 = vmatprep.subr.mxu0 0.0
    %100 = vmatpush1.msra.mxu0 %v79
    %101 = vmatprep.subr.mxu0 0.0
    %102 = vmatpush1.msra.mxu0 %v80
    %103 = vmatprep.subr.mxu0 0.0
    %104 = vmatpush1.msra.mxu0 %v81
    %105 = vmatprep.subr.mxu0 0.0
    %106 = vmatpush1.msra.mxu0 %v82
    %107 = vmatprep.subr.mxu0 0.0
    %108 = vmatpush1.msra.mxu0 %v83
    %109 = vmatprep.subr.mxu0 0.0
    %110 = vmatpush1.msra.mxu0 %v84
    %111 = vmatprep.subr.mxu0 0.0
    %112 = vmatpush1.msra.mxu0 %v85
    %113 = vmatprep.subr.mxu0 0.0
    %114 = vmatpush1.msra.mxu0 %v86
    %115 = vmatprep.subr.mxu0 0.0
    %116 = vmatpush1.msra.mxu0 %v87
    %117 = vmatprep.subr.mxu0 0.0
    %118 = vmatpush1.msra.mxu0 %v88
    %119 = vmatprep.subr.mxu0 0.0
    %120 = vmatpush1.msra.mxu0 %v89
    %121 = vmatprep.subr.mxu0 0.0
    %122 = vmatpush1.msra.mxu0 %v90
    %123 = vmatprep.subr.mxu0 0.0
    %124 = vmatpush1.msra.mxu0 0.0
    %125 = vmatprep.subr.mxu0 0.0
    %126 = vmatpush1.msra.mxu0 0.0
    %127 = vmatprep.subr.mxu0 0.0
    %128 = vmatpush1.msra.mxu0 0.0
    %129 = vmatprep.subr.mxu0 0.0
    %130 = vmatpush1.msra.mxu0 0.0
    %131 = vmatprep.subr.mxu0 0.0
    %132 = vmatpush1.msra.mxu0 0.0
    %133 = vmatprep.subr.mxu0 0.0
    %134 = vmatpush1.msra.mxu0 0.0
    %135 = vmatprep.subr.mxu0 0.0
    %136 = vmatpush1.msra.mxu0 0.0
    %137 = vmatprep.subr.mxu0 0.0
    %138 = vmatpush1.msra.mxu0 0.0
    %139 = vmatprep.subr.mxu0 0.0
    %140 = vmatpush1.msra.mxu0 0.0
    %141 = vmatprep.subr.mxu0 0.0
    %142 = vmatpush1.msra.mxu0 0.0
    %143 = vmatprep.subr.mxu0 0.0
    %144 = vmatpush1.msra.mxu0 0.0
    %145 = vmatprep.subr.mxu0 0.0
    %146 = vmatpush1.msra.mxu0 0.0
    %147 = vmatprep.subr.mxu0 0.0
    %148 = vmatpush1.msra.mxu0 0.0
    %149 = vmatprep.subr.mxu0 0.0
    %150 = vmatpush1.msra.mxu0 0.0
    %151 = vmatprep.subr.mxu0 0.0
    %152 = vmatpush1.msra.mxu0 0.0
    %153 = vmatprep.subr.mxu0 0.0
    %154 = vmatpush1.msra.mxu0 0.0
    %155 = vmatprep.mubr.f32.mxu0 0.0
    %156 = vmatmul.mubr.f32.gmra.mrb[0].mxu0 %v56
    %v157 = vpop.f32.mrb[0].mxu0
    %v158 = vadd.f32 0.0, %v157
    %v159 = vpop.f32.mrb[0].mxu0
    %160 = vdwg.mxu0
    %161 = vmatprep.subr.mxu0 0.0
    %162 = vmatpush1.msra.mxu0 %v59
    %163 = vmatprep.subr.mxu0 0.0
    %164 = vmatpush1.msra.mxu0 %v60
    %165 = vmatprep.subr.mxu0 0.0
    %166 = vmatpush1.msra.mxu0 %v61
    %167 = vmatprep.subr.mxu0 0.0
    %168 = vmatpush1.msra.mxu0 %v62
    %169 = vmatprep.subr.mxu0 0.0
    %170 = vmatpush1.msra.mxu0 %v63
    %171 = vmatprep.subr.mxu0 0.0
    %172 = vmatpush1.msra.mxu0 %v64
    %173 = vmatprep.subr.mxu0 0.0
    %174 = vmatpush1.msra.mxu0 %v65
    %175 = vmatprep.subr.mxu0 0.0
    %176 = vmatpush1.msra.mxu0 %v66
    %177 = vmatprep.subr.mxu0 0.0
    %178 = vmatpush1.msra.mxu0 %v67
    %179 = vmatprep.subr.mxu0 0.0
    %180 = vmatpush1.msra.mxu0 %v68
    %181 = vmatprep.subr.mxu0 0.0
    %182 = vmatpush1.msra.mxu0 %v69
    %183 = vmatprep.subr.mxu0 0.0
    %184 = vmatpush1.msra.mxu0 %v70
    %185 = vmatprep.subr.mxu0 0.0
    %186 = vmatpush1.msra.mxu0 %v71
    %187 = vmatprep.subr.mxu0 0.0
    %188 = vmatpush1.msra.mxu0 %v72
    %189 = vmatprep.subr.mxu0 0.0
    %190 = vmatpush1.msra.mxu0 %v73
    %191 = vmatprep.subr.mxu0 0.0
    %192 = vmatpush1.msra.mxu0 %v74
    %193 = vmatprep.subr.mxu0 0.0
    %194 = vmatpush1.msra.mxu0 0.0
    %195 = vmatprep.subr.mxu0 0.0
    %196 = vmatpush1.msra.mxu0 0.0
    %197 = vmatprep.subr.mxu0 0.0
    %198 = vmatpush1.msra.mxu0 0.0
    %199 = vmatprep.subr.mxu0 0.0
    %200 = vmatpush1.msra.mxu0 0.0
    %201 = vmatprep.subr.mxu0 0.0
    %202 = vmatpush1.msra.mxu0 0.0
    %203 = vmatprep.subr.mxu0 0.0
    %204 = vmatpush1.msra.mxu0 0.0
    %205 = vmatprep.subr.mxu0 0.0
    %206 = vmatpush1.msra.mxu0 0.0
    %207 = vmatprep.subr.mxu0 0.0
    %208 = vmatpush1.msra.mxu0 0.0
    %209 = vmatprep.subr.mxu0 0.0
    %210 = vmatpush1.msra.mxu0 0.0
    %211 = vmatprep.subr.mxu0 0.0
    %212 = vmatpush1.msra.mxu0 0.0
    %213 = vmatprep.subr.mxu0 0.0
    %214 = vmatpush1.msra.mxu0 0.0
    %215 = vmatprep.subr.mxu0 0.0
    %216 = vmatpush1.msra.mxu0 0.0
    %217 = vmatprep.subr.mxu0 0.0
    %218 = vmatpush1.msra.mxu0 0.0
    %219 = vmatprep.subr.mxu0 0.0
    %220 = vmatpush1.msra.mxu0 0.0
    %221 = vmatprep.subr.mxu0 0.0
    %222 = vmatpush1.msra.mxu0 0.0
    %223 = vmatprep.subr.mxu0 0.0
    %224 = vmatpush1.msra.mxu0 0.0
    %225 = vmatprep.mubr.f32.mxu0 0.0
    %226 = vmatmul.mubr.f32.gmra.mrb[0].mxu0 %v58
    %v227 = vpop.f32.mrb[0].mxu0
    %v228 = vadd.f32 %v158, %v227
    %v229 = vpop.f32.mrb[0].mxu0
    %230 = vdwg.mxu0
    %231 = vst [vmem:[#allocation8] sm:$0xff] %v228
    // Predicated region
    $region26: #{tpu_custom_call.1} parent=1 // pred_check
      _
    $region27: #{tpu_custom_call.1} parent=1 // pred_check_branch
      %233 = sbr.rel (0) target = $region29
    $region28: #{tpu_custom_call.1} parent=1 // pred_region
      %s235 = ssub.s32 128, 128
      %236 = vsyncadd [#allocation4], %s235
      %s238 = sshll.u32 [#allocation8], 4
      %s239 = int_to_ptr.vmem [resolvable:$true] %s238
      %241 = dma.vmem_to_hbm [thread:$0]  %s239, 128, %s3, [#allocation4]
    $region29: #{tpu_custom_call.1} parent=1 // pred_fallthru
      _
    // Predicated region
    $region30: #{tpu_custom_call.1} parent=1 // pred_check
      _
    $region31: #{tpu_custom_call.1} parent=1 // pred_check_branch
      %243 = sbr.rel (0) target = $region33
    $region32: #{tpu_custom_call.1} parent=1 // pred_region
      %244 = dma.done [#allocation4], 128
    $region33: #{tpu_custom_call.1} parent=1 // pred_fallthru
      _
    %245 = vsyncpa [#allocation3], 1
    %246 = vsyncpa [#allocation6], 1
    %247 = vsyncpa [#allocation4], 1

</llo_original>
